<compile_context>
chip_gen: v7x
topology: tpu7x:2x2x1
jax: 0.10.0
libtpu: 0.0.40
codegen_flags: <defaults>
</compile_context>

<pallas_src>
import functools

import jax
import jax.numpy as jnp
from jax.experimental import pallas as pl
from jax.experimental.pallas import tpu as pltpu

THRESHOLD = 1e-4   # self.threshold
EPS = 1e-8         # self.eps
NUM_CELL = 4       # ric, glgc, imrc, cmrc


def _round_up(x, m):
  return ((x + m - 1) // m) * m


# --------------------------------------------------------------------------- kernel
def _dyn_interaction_kernel(coef_ref,                       # SMEM (B, P*C) f32
                            img_ref, lid_ref, nod_ref,      # VMEM (1, TM_N, D)
                            w_glgc_ref, w_imrc_ref,
                            w_cm1_ref, w_cm2_ref, w_cm3_ref,  # VMEM (D, D)
                            out_ref,                        # VMEM (P, 1, TM_N, D)
                            *, num_out_path):
  """One (batch, row-tile) step: 5 MXU dots + path-weighted aggregation."""
  b = pl.program_id(0)
  f32 = jnp.float32
  img = img_ref[0]                      # (TM_N, D) compute dtype
  lid = lid_ref[0]
  nod = nod_ref[0]

  # Five (TM_N, D) x (D, D) matmuls with f32 accumulation (no zero blocks).
  y_glgc = jnp.dot(lid, w_glgc_ref[...], preferred_element_type=f32)
  y_imrc = jnp.dot(img, w_imrc_ref[...], preferred_element_type=f32)
  y_cmrc = (jnp.dot(img, w_cm1_ref[...], preferred_element_type=f32)
            + jnp.dot(lid, w_cm2_ref[...], preferred_element_type=f32)
            + jnp.dot(nod, w_cm3_ref[...], preferred_element_type=f32))

  img_f = img.astype(f32)
  embs = (jnp.maximum(img_f, 0.0),            # ric  (rectified identity)
          jnp.maximum(img_f + y_glgc, 0.0),   # glgc (imgf + lidar @ W_glgc)
          jnp.maximum(y_imrc, 0.0),           # imrc (imgf @ W_imrc)
          jnp.maximum(y_cmrc, 0.0))           # cmrc (img@W1 + lid@W2 + nod@W3)

  # coef[b, i*C + j] = normalized path_prob[j][b, i]; j == 0 already includes the
  # gate_mask term (skip connection uses emb_lst[0]).  Scalar * vector multiplies.
  for i in range(num_out_path):
    base = i * NUM_CELL
    res = coef_ref[b, base] * embs[0]
    for j in range(1, NUM_CELL):
      res = res + coef_ref[b, base + j] * embs[j]
    out_ref[i, 0] = res.astype(out_ref.dtype)


# --------------------------------------------------------------------------- wrapper
def dynamic_interaction_layer0(imgf, lidar_f, node_b, params, num_out_path=4,
                               tm=1024, compute_dtype=jnp.bfloat16, out_dtype=None):
  """Returns (aggr_res_lst [P x (B,N,D)], all_path_prob (B,P,C)) like forward_i2t.

  tm:            row-tile size over N (per batch).  The kernel is HBM-bound, so big
                 tiles win; at D<=1024 a 1024-row tile uses ~O(10 MiB) VMEM, far under
                 every generation's capacity (v5e/v6e 128 MiB, v7x 64 MiB).
  compute_dtype: HBM/MXU-input dtype for activations + weights (bf16 default:
                 ~2x less HBM traffic, faster MXU on v6e/v7x; accumulation and
                 coefficient math stay f32).  Pass jnp.float32 for a debug path.
  out_dtype:     dtype of the aggregated outputs (default: compute_dtype).
  """
  B, N, D = imgf.shape
  P = num_out_path
  C = NUM_CELL
  if out_dtype is None:
    out_dtype = compute_dtype
  f32 = jnp.float32
  relu = lambda x: jnp.maximum(x, 0.0)
  act_b = jnp.dtype(compute_dtype).itemsize
  out_b = jnp.dtype(out_dtype).itemsize

  # ---- Routers (tiny (B,D) matmuls), normalization, gate: plain JAX. ------------
  m = jnp.mean(imgf.astype(f32), axis=1)                            # (B, D)
  probs = []
  for j in range(C):
    h = relu(m @ params["wr1"][j] + params["br1"][j])               # (B, H)
    probs.append(jax.nn.sigmoid(h @ params["wr2"][j] + params["br2"][j]))  # (B, P)
  all_p = jnp.stack(probs, axis=2)                                  # (B, P, C)
  s = jnp.sum(all_p, axis=-1, keepdims=True)                        # un-normalized sum
  gate = (s < THRESHOLD).astype(f32)                                # (B, P, 1)
  all_path_prob = all_p / (s + EPS)                                 # normalized (returned)
  # Fold gate into the cell-0 coefficient (skip_emb = gate * emb_lst[0]).
  coef = all_path_prob.at[:, :, 0].add(gate[:, :, 0])               # (B, P, C)
  coef = coef.reshape(B, P * C).astype(f32)                         # SMEM scalar-prefetch arg

  # ---- Narrow HBM dtypes once in the wrapper (no per-step casts of weights). ----
  img_c = imgf.astype(compute_dtype)
  lid_c = lidar_f.astype(compute_dtype)
  nod_c = node_b.astype(compute_dtype)
  ws = [params[k].astype(compute_dtype)
        for k in ("w_glgc", "w_imrc", "w_cm1", "w_cm2", "w_cm3")]

  # ---- Row tiling over N; D stays the true (unpadded) last dim. ------------------
  gran = 8 if act_b >= 4 else 16            # sublane granule for non-full tiles
  if N <= tm:
    TM_N = N                                # full-dim block: always layout-legal
  else:
    TM_N = max(gran, (tm // gran) * gran)   # last tile partial -> masked stores
  grid_n = pl.cdiv(N, TM_N)
  if B * grid_n < 2 and N > gran:           # keep both v7x TensorCores busy
    TM_N = _round_up(pl.cdiv(N, 2), gran)
    grid_n = pl.cdiv(N, TM_N)
  grid = (B, grid_n)

  row_spec = pl.BlockSpec((1, TM_N, D), lambda b, n, _: (b, n, 0))
  w_spec = pl.BlockSpec((D, D), lambda b, n, _: (0, 0))             # resident across grid
  out_spec = pl.BlockSpec((P, 1, TM_N, D), lambda b, n, _: (0, b, n, 0))

  kernel = functools.partial(_dyn_interaction_kernel, num_out_path=P)

  # ---- VMEM budget (clamped to physical capacity) & cost estimate. ---------------
  needed = (2 * 3 * TM_N * D * act_b        # inputs, double-buffered
            + 2 * P * TM_N * D * out_b      # fused output block, double-buffered
            + 2 * 5 * D * D * act_b         # resident weights (counted conservatively)
            + 10 * TM_N * D * 4)            # f32 temporaries (y's + embs)
  try:
    vmem_cap = pltpu.get_tpu_info().vmem_capacity_bytes   # 128 MiB v5e/v6e, 64 MiB v7x
  except Exception:                                        # pragma: no cover
    vmem_cap = 64 << 20
  vmem_limit = int(min(max(needed + (8 << 20), 32 << 20), (vmem_cap * 3) // 4))

  cost = pl.CostEstimate(
      flops=2 * B * N * D * D * 5 + B * N * D * (4 + 3 + 2 * P * C),
      transcendentals=0,
      bytes_accessed=(3 * B * N * D * act_b + 5 * D * D * act_b
                      + B * P * C * 4 + P * B * N * D * out_b))

  out = pl.pallas_call(
      kernel,
      grid_spec=pltpu.PrefetchScalarGridSpec(
          num_scalar_prefetch=1,
          grid=grid,
          in_specs=[row_spec, row_spec, row_spec] + [w_spec] * 5,
          out_specs=out_spec),
      out_shape=jax.ShapeDtypeStruct((P, B, N, D), out_dtype),
      compiler_params=pltpu.CompilerParams(
          dimension_semantics=("parallel", "parallel"),
          vmem_limit_bytes=vmem_limit),
      cost_estimate=cost,
  )(coef, img_c, lid_c, nod_c, *ws)

  aggr_res_lst = [out[i] for i in range(P)]   # contiguous major-dim slices
  return aggr_res_lst, all_path_prob


# --------------------------------------------------------------------------- params
def init_params(key, D, H, P):
  ks = jax.random.split(key, 7)
  scale = 0.1
  return dict(
      w_glgc=scale * jax.random.normal(ks[0], (D, D), jnp.float32),
      w_imrc=scale * jax.random.normal(ks[1], (D, D), jnp.float32),
      w_cm1=scale * jax.random.normal(ks[2], (D, D), jnp.float32),
      w_cm2=scale * jax.random.normal(ks[3], (D, D), jnp.float32),
      w_cm3=scale * jax.random.normal(ks[4], (D, D), jnp.float32),
      wr1=scale * jax.random.normal(ks[5], (NUM_CELL, D, H), jnp.float32),
      br1=jnp.zeros((NUM_CELL, 1, H), jnp.float32),
      wr2=scale * jax.random.normal(ks[6], (NUM_CELL, H, P), jnp.float32),
      br2=jnp.zeros((NUM_CELL, 1, P), jnp.float32),
  )


# --------------------------------------------------------------------------- reference
def _reference(imgf, lidar_f, node_b, p, P):
  relu = lambda x: jnp.maximum(x, 0.0)
  emb0 = relu(imgf)
  emb1 = relu(imgf + lidar_f @ p["w_glgc"])
  emb2 = relu(imgf @ p["w_imrc"])
  emb3 = relu(imgf @ p["w_cm1"] + lidar_f @ p["w_cm2"] + node_b @ p["w_cm3"])
  embs = [emb0, emb1, emb2, emb3]
  m = imgf.mean(axis=1)
  probs = [jax.nn.sigmoid(relu(m @ p["wr1"][j] + p["br1"][j]) @ p["wr2"][j] + p["br2"][j])
           for j in range(NUM_CELL)]
  all_p = jnp.stack(probs, axis=2)
  s = all_p.sum(-1, keepdims=True)
  gate = (s < THRESHOLD).astype(jnp.float32)
  norm = all_p / (s + EPS)
  out = []
  for i in range(P):
    res = sum(norm[:, i:i + 1, j:j + 1] * embs[j] for j in range(NUM_CELL))
    res = res + gate[:, i:i + 1, :] * emb0
    out.append(res)
  return out, norm


if __name__ == "__main__":
  key = jax.random.PRNGKey(0)
  B, N, D, H, P = 2, 8, 32, 16, 4
  k1, k2, k3, kp = jax.random.split(key, 4)
  imgf = jax.random.normal(k1, (B, N, D), jnp.float32)
  lidar_f = jax.random.normal(k2, (B, N, D), jnp.float32)
  node_b = jax.random.normal(k3, (B, N, D), jnp.float32)
  params = init_params(kp, D, H, P)

  ref_lst, ref_prob = _reference(imgf, lidar_f, node_b, params, P)

  # --- f32 debug path (tight tolerance vs reference) ---
  aggr_res_lst, all_path_prob = dynamic_interaction_layer0(
      imgf, lidar_f, node_b, params, num_out_path=P, compute_dtype=jnp.float32)
  jax.block_until_ready(all_path_prob)
  for a in aggr_res_lst:
    jax.block_until_ready(a)
  assert all_path_prob.shape == (B, P, NUM_CELL)
  assert jnp.allclose(all_path_prob, ref_prob, rtol=1e-3, atol=1e-3)
  for a, r in zip(aggr_res_lst, ref_lst):
    assert a.shape == (B, N, D)
    assert jnp.allclose(a, r, rtol=1e-3, atol=1e-3)

  # --- default bf16 fast path (bf16 HBM activations/weights/outputs, f32 accum) ---
  aggr_bf16, prob_bf16 = dynamic_interaction_layer0(
      imgf, lidar_f, node_b, params, num_out_path=P)
  jax.block_until_ready(prob_bf16)
  for a in aggr_bf16:
    jax.block_until_ready(a)
  assert jnp.allclose(prob_bf16, ref_prob, rtol=1e-3, atol=1e-3)
  for a, r in zip(aggr_bf16, ref_lst):
    assert a.shape == (B, N, D)
    assert jnp.allclose(a.astype(jnp.float32), r, rtol=5e-2, atol=5e-2)

  print("KERNEL_OK")
</pallas_src>

<mosaic_0001>
module attributes {stable_mosaic.version = 11 : i64} {
  func.func @_dyn_interaction_kernel(%arg0: i32, %arg1: i32, %arg2: memref<2x16xf32, #tpu.memory_space<smem>>, %arg3: memref<1x8x32xf32, #tpu.memory_space<vmem>>, %arg4: memref<1x8x32xf32, #tpu.memory_space<vmem>>, %arg5: memref<1x8x32xf32, #tpu.memory_space<vmem>>, %arg6: memref<32x32xf32, #tpu.memory_space<vmem>>, %arg7: memref<32x32xf32, #tpu.memory_space<vmem>>, %arg8: memref<32x32xf32, #tpu.memory_space<vmem>>, %arg9: memref<32x32xf32, #tpu.memory_space<vmem>>, %arg10: memref<32x32xf32, #tpu.memory_space<vmem>>, %arg11: memref<4x1x8x32xf32, #tpu.memory_space<vmem>>) attributes {dimension_semantics = [#tpu.dimension_semantics<parallel>, #tpu.dimension_semantics<parallel>], iteration_bounds = array<i64: 2, 1>, scalar_prefetch = 1 : i64, scratch_operands = 0 : i64, tpu.core_type = #tpu.core_type<tc>, window_params = [{transform_indices = @transform_0, window_bounds = array<i64: 1, 8, 32>}, {transform_indices = @transform_1, window_bounds = array<i64: 1, 8, 32>}, {transform_indices = @transform_2, window_bounds = array<i64: 1, 8, 32>}, {pipeline_mode = #tpu.pipeline_mode<synchronous>, transform_indices = @transform_3, window_bounds = array<i64: 32, 32>}, {pipeline_mode = #tpu.pipeline_mode<synchronous>, transform_indices = @transform_4, window_bounds = array<i64: 32, 32>}, {pipeline_mode = #tpu.pipeline_mode<synchronous>, transform_indices = @transform_5, window_bounds = array<i64: 32, 32>}, {pipeline_mode = #tpu.pipeline_mode<synchronous>, transform_indices = @transform_6, window_bounds = array<i64: 32, 32>}, {pipeline_mode = #tpu.pipeline_mode<synchronous>, transform_indices = @transform_7, window_bounds = array<i64: 32, 32>}, {transform_indices = @transform_8, window_bounds = array<i64: 4, 1, 8, 32>}]} {
    %c0 = arith.constant 0 : index
    %c0_0 = arith.constant 0 : index
    %c0_1 = arith.constant 0 : index
    %0 = vector.load %arg3[%c0, %c0_0, %c0_1] : memref<1x8x32xf32, #tpu.memory_space<vmem>>, vector<1x8x32xf32>
    %1 = vector.shape_cast %0 : vector<1x8x32xf32> to vector<8x32xf32>
    %c0_2 = arith.constant 0 : index
    %c0_3 = arith.constant 0 : index
    %c0_4 = arith.constant 0 : index
    %2 = vector.load %arg4[%c0_2, %c0_3, %c0_4] : memref<1x8x32xf32, #tpu.memory_space<vmem>>, vector<1x8x32xf32>
    %3 = vector.shape_cast %2 : vector<1x8x32xf32> to vector<8x32xf32>
    %c0_5 = arith.constant 0 : index
    %c0_6 = arith.constant 0 : index
    %c0_7 = arith.constant 0 : index
    %4 = vector.load %arg5[%c0_5, %c0_6, %c0_7] : memref<1x8x32xf32, #tpu.memory_space<vmem>>, vector<1x8x32xf32>
    %5 = vector.shape_cast %4 : vector<1x8x32xf32> to vector<8x32xf32>
    %c0_8 = arith.constant 0 : index
    %c0_9 = arith.constant 0 : index
    %6 = vector.load %arg6[%c0_8, %c0_9] : memref<32x32xf32, #tpu.memory_space<vmem>>, vector<32x32xf32>
    %cst = arith.constant dense<0.000000e+00> : vector<8x32xf32>
    %7 = tpu.matmul %3, %6, %cst {dimension_numbers = #tpu.dot_dimension_numbers<[1], [0], [0], [1], [0, 0, 1, 1], [], []>} : vector<8x32xf32>, vector<32x32xf32>, vector<8x32xf32> -> vector<8x32xf32>
    %c0_10 = arith.constant 0 : index
    %c0_11 = arith.constant 0 : index
    %8 = vector.load %arg7[%c0_10, %c0_11] : memref<32x32xf32, #tpu.memory_space<vmem>>, vector<32x32xf32>
    %cst_12 = arith.constant dense<0.000000e+00> : vector<8x32xf32>
    %9 = tpu.matmul %1, %8, %cst_12 {dimension_numbers = #tpu.dot_dimension_numbers<[1], [0], [0], [1], [0, 0, 1, 1], [], []>} : vector<8x32xf32>, vector<32x32xf32>, vector<8x32xf32> -> vector<8x32xf32>
    %c0_13 = arith.constant 0 : index
    %c0_14 = arith.constant 0 : index
    %10 = vector.load %arg8[%c0_13, %c0_14] : memref<32x32xf32, #tpu.memory_space<vmem>>, vector<32x32xf32>
    %cst_15 = arith.constant dense<0.000000e+00> : vector<8x32xf32>
    %11 = tpu.matmul %1, %10, %cst_15 {dimension_numbers = #tpu.dot_dimension_numbers<[1], [0], [0], [1], [0, 0, 1, 1], [], []>} : vector<8x32xf32>, vector<32x32xf32>, vector<8x32xf32> -> vector<8x32xf32>
    %c0_16 = arith.constant 0 : index
    %c0_17 = arith.constant 0 : index
    %12 = vector.load %arg9[%c0_16, %c0_17] : memref<32x32xf32, #tpu.memory_space<vmem>>, vector<32x32xf32>
    %cst_18 = arith.constant dense<0.000000e+00> : vector<8x32xf32>
    %13 = tpu.matmul %3, %12, %cst_18 {dimension_numbers = #tpu.dot_dimension_numbers<[1], [0], [0], [1], [0, 0, 1, 1], [], []>} : vector<8x32xf32>, vector<32x32xf32>, vector<8x32xf32> -> vector<8x32xf32>
    %14 = arith.addf %11, %13 : vector<8x32xf32>
    %c0_19 = arith.constant 0 : index
    %c0_20 = arith.constant 0 : index
    %15 = vector.load %arg10[%c0_19, %c0_20] : memref<32x32xf32, #tpu.memory_space<vmem>>, vector<32x32xf32>
    %cst_21 = arith.constant dense<0.000000e+00> : vector<8x32xf32>
    %16 = tpu.matmul %5, %15, %cst_21 {dimension_numbers = #tpu.dot_dimension_numbers<[1], [0], [0], [1], [0, 0, 1, 1], [], []>} : vector<8x32xf32>, vector<32x32xf32>, vector<8x32xf32> -> vector<8x32xf32>
    %17 = arith.addf %14, %16 : vector<8x32xf32>
    %cst_22 = arith.constant 0.000000e+00 : f32
    %18 = vector.broadcast %cst_22 : f32 to vector<8x32xf32>
    %19 = arith.maximumf %1, %18 : vector<8x32xf32>
    %20 = arith.addf %1, %7 : vector<8x32xf32>
    %cst_23 = arith.constant 0.000000e+00 : f32
    %21 = vector.broadcast %cst_23 : f32 to vector<8x32xf32>
    %22 = arith.maximumf %20, %21 : vector<8x32xf32>
    %cst_24 = arith.constant 0.000000e+00 : f32
    %23 = vector.broadcast %cst_24 : f32 to vector<8x32xf32>
    %24 = arith.maximumf %9, %23 : vector<8x32xf32>
    %cst_25 = arith.constant 0.000000e+00 : f32
    %25 = vector.broadcast %cst_25 : f32 to vector<8x32xf32>
    %26 = arith.maximumf %17, %25 : vector<8x32xf32>
    %27 = arith.index_cast %arg0 : i32 to index
    %c0_26 = arith.constant 0 : index
    %28 = memref.load %arg2[%27, %c0_26] : memref<2x16xf32, #tpu.memory_space<smem>>
    %29 = vector.broadcast %28 : f32 to vector<8x32xf32>
    %30 = arith.mulf %29, %19 : vector<8x32xf32>
    %31 = arith.index_cast %arg0 : i32 to index
    %c1 = arith.constant 1 : index
    %32 = memref.load %arg2[%31, %c1] : memref<2x16xf32, #tpu.memory_space<smem>>
    %33 = vector.broadcast %32 : f32 to vector<8x32xf32>
    %34 = arith.mulf %33, %22 : vector<8x32xf32>
    %35 = arith.addf %30, %34 : vector<8x32xf32>
    %36 = arith.index_cast %arg0 : i32 to index
    %c2 = arith.constant 2 : index
    %37 = memref.load %arg2[%36, %c2] : memref<2x16xf32, #tpu.memory_space<smem>>
    %38 = vector.broadcast %37 : f32 to vector<8x32xf32>
    %39 = arith.mulf %38, %24 : vector<8x32xf32>
    %40 = arith.addf %35, %39 : vector<8x32xf32>
    %41 = arith.index_cast %arg0 : i32 to index
    %c3 = arith.constant 3 : index
    %42 = memref.load %arg2[%41, %c3] : memref<2x16xf32, #tpu.memory_space<smem>>
    %43 = vector.broadcast %42 : f32 to vector<8x32xf32>
    %44 = arith.mulf %43, %26 : vector<8x32xf32>
    %45 = arith.addf %40, %44 : vector<8x32xf32>
    %c0_27 = arith.constant 0 : index
    %c0_28 = arith.constant 0 : index
    %c0_29 = arith.constant 0 : index
    %c0_30 = arith.constant 0 : index
    %46 = vector.load %arg11[%c0_27, %c0_28, %c0_29, %c0_30] : memref<4x1x8x32xf32, #tpu.memory_space<vmem>>, vector<1x1x8x32xf32>
    %47 = vector.shape_cast %46 : vector<1x1x8x32xf32> to vector<8x32xf32>
    %48 = vector.shape_cast %45 : vector<8x32xf32> to vector<1x1x8x32xf32>
    tpu.vector_store %arg11[%c0_27, %c0_28, %c0_29, %c0_30], %48 {strides = array<i32>} : memref<4x1x8x32xf32, #tpu.memory_space<vmem>>, vector<1x1x8x32xf32>,
    %49 = arith.index_cast %arg0 : i32 to index
    %c4 = arith.constant 4 : index
    %50 = memref.load %arg2[%49, %c4] : memref<2x16xf32, #tpu.memory_space<smem>>
    %51 = vector.broadcast %50 : f32 to vector<8x32xf32>
    %52 = arith.mulf %51, %19 : vector<8x32xf32>
    %53 = arith.index_cast %arg0 : i32 to index
    %c5 = arith.constant 5 : index
    %54 = memref.load %arg2[%53, %c5] : memref<2x16xf32, #tpu.memory_space<smem>>
    %55 = vector.broadcast %54 : f32 to vector<8x32xf32>
    %56 = arith.mulf %55, %22 : vector<8x32xf32>
    %57 = arith.addf %52, %56 : vector<8x32xf32>
    %58 = arith.index_cast %arg0 : i32 to index
    %c6 = arith.constant 6 : index
    %59 = memref.load %arg2[%58, %c6] : memref<2x16xf32, #tpu.memory_space<smem>>
    %60 = vector.broadcast %59 : f32 to vector<8x32xf32>
    %61 = arith.mulf %60, %24 : vector<8x32xf32>
    %62 = arith.addf %57, %61 : vector<8x32xf32>
    %63 = arith.index_cast %arg0 : i32 to index
    %c7 = arith.constant 7 : index
    %64 = memref.load %arg2[%63, %c7] : memref<2x16xf32, #tpu.memory_space<smem>>
    %65 = vector.broadcast %64 : f32 to vector<8x32xf32>
    %66 = arith.mulf %65, %26 : vector<8x32xf32>
    %67 = arith.addf %62, %66 : vector<8x32xf32>
    %c1_31 = arith.constant 1 : index
    %c0_32 = arith.constant 0 : index
    %c0_33 = arith.constant 0 : index
    %c0_34 = arith.constant 0 : index
    %68 = vector.load %arg11[%c1_31, %c0_32, %c0_33, %c0_34] : memref<4x1x8x32xf32, #tpu.memory_space<vmem>>, vector<1x1x8x32xf32>
    %69 = vector.shape_cast %68 : vector<1x1x8x32xf32> to vector<8x32xf32>
    %70 = vector.shape_cast %67 : vector<8x32xf32> to vector<1x1x8x32xf32>
    tpu.vector_store %arg11[%c1_31, %c0_32, %c0_33, %c0_34], %70 {strides = array<i32>} : memref<4x1x8x32xf32, #tpu.memory_space<vmem>>, vector<1x1x8x32xf32>,
    %71 = arith.index_cast %arg0 : i32 to index
    %c8 = arith.constant 8 : index
    %72 = memref.load %arg2[%71, %c8] : memref<2x16xf32, #tpu.memory_space<smem>>
    %73 = vector.broadcast %72 : f32 to vector<8x32xf32>
    %74 = arith.mulf %73, %19 : vector<8x32xf32>
    %75 = arith.index_cast %arg0 : i32 to index
    %c9 = arith.constant 9 : index
    %76 = memref.load %arg2[%75, %c9] : memref<2x16xf32, #tpu.memory_space<smem>>
    %77 = vector.broadcast %76 : f32 to vector<8x32xf32>
    %78 = arith.mulf %77, %22 : vector<8x32xf32>
    %79 = arith.addf %74, %78 : vector<8x32xf32>
    %80 = arith.index_cast %arg0 : i32 to index
    %c10 = arith.constant 10 : index
    %81 = memref.load %arg2[%80, %c10] : memref<2x16xf32, #tpu.memory_space<smem>>
    %82 = vector.broadcast %81 : f32 to vector<8x32xf32>
    %83 = arith.mulf %82, %24 : vector<8x32xf32>
    %84 = arith.addf %79, %83 : vector<8x32xf32>
    %85 = arith.index_cast %arg0 : i32 to index
    %c11 = arith.constant 11 : index
    %86 = memref.load %arg2[%85, %c11] : memref<2x16xf32, #tpu.memory_space<smem>>
    %87 = vector.broadcast %86 : f32 to vector<8x32xf32>
    %88 = arith.mulf %87, %26 : vector<8x32xf32>
    %89 = arith.addf %84, %88 : vector<8x32xf32>
    %c2_35 = arith.constant 2 : index
    %c0_36 = arith.constant 0 : index
    %c0_37 = arith.constant 0 : index
    %c0_38 = arith.constant 0 : index
    %90 = vector.load %arg11[%c2_35, %c0_36, %c0_37, %c0_38] : memref<4x1x8x32xf32, #tpu.memory_space<vmem>>, vector<1x1x8x32xf32>
    %91 = vector.shape_cast %90 : vector<1x1x8x32xf32> to vector<8x32xf32>
    %92 = vector.shape_cast %89 : vector<8x32xf32> to vector<1x1x8x32xf32>
    tpu.vector_store %arg11[%c2_35, %c0_36, %c0_37, %c0_38], %92 {strides = array<i32>} : memref<4x1x8x32xf32, #tpu.memory_space<vmem>>, vector<1x1x8x32xf32>,
    %93 = arith.index_cast %arg0 : i32 to index
    %c12 = arith.constant 12 : index
    %94 = memref.load %arg2[%93, %c12] : memref<2x16xf32, #tpu.memory_space<smem>>
    %95 = vector.broadcast %94 : f32 to vector<8x32xf32>
    %96 = arith.mulf %95, %19 : vector<8x32xf32>
    %97 = arith.index_cast %arg0 : i32 to index
    %c13 = arith.constant 13 : index
    %98 = memref.load %arg2[%97, %c13] : memref<2x16xf32, #tpu.memory_space<smem>>
    %99 = vector.broadcast %98 : f32 to vector<8x32xf32>
    %100 = arith.mulf %99, %22 : vector<8x32xf32>
    %101 = arith.addf %96, %100 : vector<8x32xf32>
    %102 = arith.index_cast %arg0 : i32 to index
    %c14 = arith.constant 14 : index
    %103 = memref.load %arg2[%102, %c14] : memref<2x16xf32, #tpu.memory_space<smem>>
    %104 = vector.broadcast %103 : f32 to vector<8x32xf32>
    %105 = arith.mulf %104, %24 : vector<8x32xf32>
    %106 = arith.addf %101, %105 : vector<8x32xf32>
    %107 = arith.index_cast %arg0 : i32 to index
    %c15 = arith.constant 15 : index
    %108 = memref.load %arg2[%107, %c15] : memref<2x16xf32, #tpu.memory_space<smem>>
    %109 = vector.broadcast %108 : f32 to vector<8x32xf32>
    %110 = arith.mulf %109, %26 : vector<8x32xf32>
    %111 = arith.addf %106, %110 : vector<8x32xf32>
    %c3_39 = arith.constant 3 : index
    %c0_40 = arith.constant 0 : index
    %c0_41 = arith.constant 0 : index
    %c0_42 = arith.constant 0 : index
    %112 = vector.load %arg11[%c3_39, %c0_40, %c0_41, %c0_42] : memref<4x1x8x32xf32, #tpu.memory_space<vmem>>, vector<1x1x8x32xf32>
    %113 = vector.shape_cast %112 : vector<1x1x8x32xf32> to vector<8x32xf32>
    %114 = vector.shape_cast %111 : vector<8x32xf32> to vector<1x1x8x32xf32>
    tpu.vector_store %arg11[%c3_39, %c0_40, %c0_41, %c0_42], %114 {strides = array<i32>} : memref<4x1x8x32xf32, #tpu.memory_space<vmem>>, vector<1x1x8x32xf32>,
    return
  }
  func.func @transform_0(%arg0: i32, %arg1: i32, %arg2: memref<2x16xf32, #tpu.memory_space<smem>>) -> (i32, i32, i32) {
    %c0_i32 = arith.constant 0 : i32
    %c0_i32_0 = arith.constant 0 : i32
    return %arg0, %arg1, %c0_i32 : i32, i32, i32
  }
  func.func @transform_1(%arg0: i32, %arg1: i32, %arg2: memref<2x16xf32, #tpu.memory_space<smem>>) -> (i32, i32, i32) {
    %c0_i32 = arith.constant 0 : i32
    %c0_i32_0 = arith.constant 0 : i32
    return %arg0, %arg1, %c0_i32 : i32, i32, i32
  }
  func.func @transform_2(%arg0: i32, %arg1: i32, %arg2: memref<2x16xf32, #tpu.memory_space<smem>>) -> (i32, i32, i32) {
    %c0_i32 = arith.constant 0 : i32
    %c0_i32_0 = arith.constant 0 : i32
    return %arg0, %arg1, %c0_i32 : i32, i32, i32
  }
  func.func @transform_3(%arg0: i32, %arg1: i32, %arg2: memref<2x16xf32, #tpu.memory_space<smem>>) -> (i32, i32) {
    %c0_i32 = arith.constant 0 : i32
    %c0_i32_0 = arith.constant 0 : i32
    %c0_i32_1 = arith.constant 0 : i32
    return %c0_i32, %c0_i32_0 : i32, i32
  }
  func.func @transform_4(%arg0: i32, %arg1: i32, %arg2: memref<2x16xf32, #tpu.memory_space<smem>>) -> (i32, i32) {
    %c0_i32 = arith.constant 0 : i32
    %c0_i32_0 = arith.constant 0 : i32
    %c0_i32_1 = arith.constant 0 : i32
    return %c0_i32, %c0_i32_0 : i32, i32
  }
  func.func @transform_5(%arg0: i32, %arg1: i32, %arg2: memref<2x16xf32, #tpu.memory_space<smem>>) -> (i32, i32) {
    %c0_i32 = arith.constant 0 : i32
    %c0_i32_0 = arith.constant 0 : i32
    %c0_i32_1 = arith.constant 0 : i32
    return %c0_i32, %c0_i32_0 : i32, i32
  }
  func.func @transform_6(%arg0: i32, %arg1: i32, %arg2: memref<2x16xf32, #tpu.memory_space<smem>>) -> (i32, i32) {
    %c0_i32 = arith.constant 0 : i32
    %c0_i32_0 = arith.constant 0 : i32
    %c0_i32_1 = arith.constant 0 : i32
    return %c0_i32, %c0_i32_0 : i32, i32
  }
  func.func @transform_7(%arg0: i32, %arg1: i32, %arg2: memref<2x16xf32, #tpu.memory_space<smem>>) -> (i32, i32) {
    %c0_i32 = arith.constant 0 : i32
    %c0_i32_0 = arith.constant 0 : i32
    %c0_i32_1 = arith.constant 0 : i32
    return %c0_i32, %c0_i32_0 : i32, i32
  }
  func.func @transform_8(%arg0: i32, %arg1: i32, %arg2: memref<2x16xf32, #tpu.memory_space<smem>>) -> (i32, i32, i32, i32) {
    %c0_i32 = arith.constant 0 : i32
    %c0_i32_0 = arith.constant 0 : i32
    %c0_i32_1 = arith.constant 0 : i32
    return %c0_i32, %arg0, %arg1, %c0_i32_0 : i32, i32, i32, i32
  }
}

</mosaic_0001>

<llo_original>
// kernel: tpu_custom_call.1
$region0: #{tpu_custom_call.1}
  #allocation0 [shape = 'u32[]', space=smem, size = 0x4, offset = 0x4, fixed_abs, tag = 'smem constant byte address 0x4 - core index']
  #allocation1 [shape = 'u32[144,128]{1,0:T(1,128)}', space=vmem, size = 0x12000, scoped, tag = 'internal scratch']
  #allocation2 [shape = 's32[1]{0}', space=sflag, size = 0x4, scoped, tag = 'scoped memory for tpu_custom_call.1']
  #allocation3 [shape = 'u8[1024]{0}', space=smem, size = 0x400, scoped, tag = 'prefetched SMEM operand 0']
  %s0 = inlined_call_operand.hbm [shape: f32[2,16], index: 0, kind: input, shape index: {}]
  %s1 = inlined_call_operand.hbm [shape: f32[2,8,32], index: 1, kind: input, shape index: {}]
  %s2 = inlined_call_operand.hbm [shape: f32[2,8,32], index: 2, kind: input, shape index: {}]
  %s3 = inlined_call_operand.hbm [shape: f32[2,8,32], index: 3, kind: input, shape index: {}]
  %s4 = inlined_call_operand.hbm [shape: f32[32,32], index: 4, kind: input, shape index: {}]
  %s5 = inlined_call_operand.hbm [shape: f32[32,32], index: 5, kind: input, shape index: {}]
  %s6 = inlined_call_operand.hbm [shape: f32[32,32], index: 6, kind: input, shape index: {}]
  %s7 = inlined_call_operand.hbm [shape: f32[32,32], index: 7, kind: input, shape index: {}]
  %s8 = inlined_call_operand.hbm [shape: f32[32,32], index: 8, kind: input, shape index: {}]
  %s9 = inlined_call_operand.hbm [shape: f32[4,2,8,32], index: 9, kind: output, shape index: {}]
  %s10 = sld [smem:[#allocation0]]
  $region97: #{tpu_custom_call.1} parent=0
    _
  %s12 = ssub.s32 1, %s10
  %s13 = scalar_select 0, %s12, %s10
  %15 = dma.hbm_to_smem %s0, 32, [#allocation3], [#allocation2]
  %16 = dma.done [#allocation2], 32
  %17 = sfence
  $region1: #{tpu_custom_call.1} parent=0
    #allocation4 [shape = 'u8[8192]{0}', space=vmem, size = 0x2000, scoped, tag = 'input window, operand 1']
    #allocation5 [shape = 's32[2]{0}', space=sflag, size = 0x8, scoped, tag = 'scoped memory for tpu_custom_call.1']
    #allocation6 [shape = 's32[2]{0}', space=sflag, size = 0x8, scoped, tag = 'scoped memory for tpu_custom_call.1']
    #allocation7 [shape = 'u8[8192]{0}', space=vmem, size = 0x2000, scoped, tag = 'input window, operand 2']
    #allocation8 [shape = 's32[2]{0}', space=sflag, size = 0x8, scoped, tag = 'scoped memory for tpu_custom_call.1']
    #allocation9 [shape = 'u8[8192]{0}', space=vmem, size = 0x2000, scoped, tag = 'input window, operand 3']
    #allocation10 [shape = 'u8[16384]{0}', space=vmem, size = 0x4000, scoped, tag = 'input window, operand 4, single buffered']
    #allocation11 [shape = 's32[1]{0}', space=sflag, size = 0x4, scoped, tag = 'scoped memory for tpu_custom_call.1']
    #allocation12 [shape = 'u8[16384]{0}', space=vmem, size = 0x4000, scoped, tag = 'input window, operand 5, single buffered']
    #allocation13 [shape = 'u8[16384]{0}', space=vmem, size = 0x4000, scoped, tag = 'input window, operand 6, single buffered']
    #allocation14 [shape = 's32[1]{0}', space=sflag, size = 0x4, scoped, tag = 'scoped memory for tpu_custom_call.1']
    #allocation15 [shape = 'u8[16384]{0}', space=vmem, size = 0x4000, scoped, tag = 'input window, operand 7, single buffered']
    #allocation16 [shape = 'u8[16384]{0}', space=vmem, size = 0x4000, scoped, tag = 'input window, operand 8, single buffered']
    #allocation17 [shape = 's32[1]{0}', space=sflag, size = 0x4, scoped, tag = 'scoped memory for tpu_custom_call.1']
    #allocation18 [shape = 'u8[32768]{0}', space=vmem, size = 0x8000, scoped, tag = 'output window, operand 0']
    %18 = vsyncpa [#allocation5], 0
    %s19 = scalar_lea.sflag [#allocation5], 1
    %20 = vsyncpa %s19, 0
    %21 = vsyncpa [#allocation8], 0
    %s22 = scalar_lea.sflag [#allocation8], 1
    %23 = vsyncpa %s22, 0
    %24 = vsyncpa [#allocation11], 0
    %25 = vsyncpa [#allocation14], 0
    %26 = vsyncpa [#allocation17], 0
    %27 = vsyncpa [#allocation6], 0
    %s28 = scalar_lea.sflag [#allocation6], 1
    %29 = vsyncpa %s28, 0
    loop: start=0, step=1, limit=4
    $region2: #{tpu_custom_call.1} parent=1 // loop_pre_header
      _
    $region3: #{tpu_custom_call.1} parent=1 // loop_header
      %s31 = sphi 0, %s35
      %p32 = scmp.ge.s32.totalorder %s31, 4
      %s38 = sphi 0, %s50
      %s39 = sphi 0, %s46
      %s40 = sphi 0, %s38
      %s41 = sphi 0, %s39
      %s42 = sphi 0, %s40
      %s43 = sphi 0, %s41
      %s55 = sphi 0, %s57
      %s58 = sphi 0, %s55
      %s59 = sphi 0, %s58
      %s75 = sphi 0, %s59
      %s83 = sphi 0, %s85
      %s86 = sphi 0, %s83
      %s87 = sphi 0, %s86
      %s103 = sphi 0, %s87
      %s111 = sphi 0, %s113
      %s114 = sphi 0, %s111
      %s115 = sphi 0, %s114
      %s131 = sphi 0, %s115
      %s135 = sphi 0, %s135
      %s137 = sphi 0, %s135
      %s138 = sphi 0, %s137
      %s152 = sphi 0, %s138
      %s156 = sphi 0, %s156
      %s158 = sphi 0, %s156
      %s159 = sphi 0, %s158
      %s173 = sphi 0, %s159
      %s177 = sphi 0, %s177
      %s179 = sphi 0, %s177
      %s180 = sphi 0, %s179
      %s194 = sphi 0, %s180
      %s198 = sphi 0, %s198
      %s200 = sphi 0, %s198
      %s201 = sphi 0, %s200
      %s215 = sphi 0, %s201
      %s219 = sphi 0, %s219
      %s221 = sphi 0, %s219
      %s222 = sphi 0, %s221
      %s236 = sphi 0, %s222
      %s244 = sphi 0, %s246
      %s247 = sphi 0, %s244
      %s248 = sphi 0, %s247
      %s264 = sphi 0, %s248
    $region4: #{tpu_custom_call.1} parent=1 // loop_header_branch
      %34 = sbr.rel (%p32) target = $region8
    $region5: #{tpu_custom_call.1} parent=1 // loop_body
      %s36 = ssub.s32 %s31, 1
      %s37 = ssub.s32 %s31, 2
      %s44 = sadd.s32 1, %s39
      %p45 = scmp.ge.s32.totalorder %s44, 1
      %s46 = scalar_select %p45, 0, %s44
      %s47 = sadd.s32 1, %s38
      %s48 = scalar_select %p45, %s47, %s38
      %p49 = scmp.ge.s32.totalorder %s48, 2
      %s50 = scalar_select %p49, 0, %s48
      %s51 = ssub.s32 %s38, %s50
      %s52 = ssub.s32 %s39, %s46
      %s53 = sor.u32 %s51, %s52
      %p54 = scmp.eq.s32.totalorder %s53, 0
      %s56 = sadd.s32 %s55, 1
      %s57 = scalar_select %p54, %s55, %s56
      %p60 = pneg %p54
      %p61 = scmp.eq.s32.totalorder %s31, 1
      %p62 = por %p60, %p61
      %p63 = scmp.ne.s32.totalorder %s55, %s58
      %p64 = scmp.eq.s32.totalorder %s31, 0
      %p65 = por %p63, %p64
      %p66 = scmp.ne.s32.totalorder %s55, %s58
      %p67 = scmp.eq.s32.totalorder %s36, 1
      %p68 = por %p66, %p67
      %p69 = scmp.ne.s32.totalorder %s58, %s59
      %p70 = scmp.eq.s32.totalorder %s36, 0
      %p71 = por %p69, %p70
      %p72 = scmp.ne.s32.totalorder %s58, %s59
      %p73 = scmp.eq.s32.totalorder %s37, 1
      %p74 = por %p72, %p73
      %p76 = scmp.ne.s32.totalorder %s59, %s75
      %p77 = scmp.eq.s32.totalorder %s37, 0
      %p78 = por %p76, %p77
      %s79 = ssub.s32 %s38, %s50
      %s80 = ssub.s32 %s39, %s46
      %s81 = sor.u32 %s79, %s80
      %p82 = scmp.eq.s32.totalorder %s81, 0
      %s84 = sadd.s32 %s83, 1
      %s85 = scalar_select %p82, %s83, %s84
      %p88 = pneg %p82
      %p89 = scmp.eq.s32.totalorder %s31, 1
      %p90 = por %p88, %p89
      %p91 = scmp.ne.s32.totalorder %s83, %s86
      %p92 = scmp.eq.s32.totalorder %s31, 0
      %p93 = por %p91, %p92
      %p94 = scmp.ne.s32.totalorder %s83, %s86
      %p95 = scmp.eq.s32.totalorder %s36, 1
      %p96 = por %p94, %p95
      %p97 = scmp.ne.s32.totalorder %s86, %s87
      %p98 = scmp.eq.s32.totalorder %s36, 0
      %p99 = por %p97, %p98
      %p100 = scmp.ne.s32.totalorder %s86, %s87
      %p101 = scmp.eq.s32.totalorder %s37, 1
      %p102 = por %p100, %p101
      %p104 = scmp.ne.s32.totalorder %s87, %s103
      %p105 = scmp.eq.s32.totalorder %s37, 0
      %p106 = por %p104, %p105
      %s107 = ssub.s32 %s38, %s50
      %s108 = ssub.s32 %s39, %s46
      %s109 = sor.u32 %s107, %s108
      %p110 = scmp.eq.s32.totalorder %s109, 0
      %s112 = sadd.s32 %s111, 1
      %s113 = scalar_select %p110, %s111, %s112
      %p116 = pneg %p110
      %p117 = scmp.eq.s32.totalorder %s31, 1
      %p118 = por %p116, %p117
      %p119 = scmp.ne.s32.totalorder %s111, %s114
      %p120 = scmp.eq.s32.totalorder %s31, 0
      %p121 = por %p119, %p120
      %p122 = scmp.ne.s32.totalorder %s111, %s114
      %p123 = scmp.eq.s32.totalorder %s36, 1
      %p124 = por %p122, %p123
      %p125 = scmp.ne.s32.totalorder %s114, %s115
      %p126 = scmp.eq.s32.totalorder %s36, 0
      %p127 = por %p125, %p126
      %p128 = scmp.ne.s32.totalorder %s114, %s115
      %p129 = scmp.eq.s32.totalorder %s37, 1
      %p130 = por %p128, %p129
      %p132 = scmp.ne.s32.totalorder %s115, %s131
      %p133 = scmp.eq.s32.totalorder %s37, 0
      %p134 = por %p132, %p133
      %s136 = sadd.s32 %s135, 1
      %p139 = scmp.eq.s32.totalorder %s31, 1
      %p140 = scmp.ne.s32.totalorder %s135, %s137
      %p141 = scmp.eq.s32.totalorder %s31, 0
      %p142 = por %p140, %p141
      %p143 = scmp.ne.s32.totalorder %s135, %s137
      %p144 = scmp.eq.s32.totalorder %s36, 1
      %p145 = por %p143, %p144
      %p146 = scmp.ne.s32.totalorder %s137, %s138
      %p147 = scmp.eq.s32.totalorder %s36, 0
      %p148 = por %p146, %p147
      %p149 = scmp.ne.s32.totalorder %s137, %s138
      %p150 = scmp.eq.s32.totalorder %s37, 1
      %p151 = por %p149, %p150
      %p153 = scmp.ne.s32.totalorder %s138, %s152
      %p154 = scmp.eq.s32.totalorder %s37, 0
      %p155 = por %p153, %p154
      %s157 = sadd.s32 %s156, 1
      %p160 = scmp.eq.s32.totalorder %s31, 1
      %p161 = scmp.ne.s32.totalorder %s156, %s158
      %p162 = scmp.eq.s32.totalorder %s31, 0
      %p163 = por %p161, %p162
      %p164 = scmp.ne.s32.totalorder %s156, %s158
      %p165 = scmp.eq.s32.totalorder %s36, 1
      %p166 = por %p164, %p165
      %p167 = scmp.ne.s32.totalorder %s158, %s159
      %p168 = scmp.eq.s32.totalorder %s36, 0
      %p169 = por %p167, %p168
      %p170 = scmp.ne.s32.totalorder %s158, %s159
      %p171 = scmp.eq.s32.totalorder %s37, 1
      %p172 = por %p170, %p171
      %p174 = scmp.ne.s32.totalorder %s159, %s173
      %p175 = scmp.eq.s32.totalorder %s37, 0
      %p176 = por %p174, %p175
      %s178 = sadd.s32 %s177, 1
      %p181 = scmp.eq.s32.totalorder %s31, 1
      %p182 = scmp.ne.s32.totalorder %s177, %s179
      %p183 = scmp.eq.s32.totalorder %s31, 0
      %p184 = por %p182, %p183
      %p185 = scmp.ne.s32.totalorder %s177, %s179
      %p186 = scmp.eq.s32.totalorder %s36, 1
      %p187 = por %p185, %p186
      %p188 = scmp.ne.s32.totalorder %s179, %s180
      %p189 = scmp.eq.s32.totalorder %s36, 0
      %p190 = por %p188, %p189
      %p191 = scmp.ne.s32.totalorder %s179, %s180
      %p192 = scmp.eq.s32.totalorder %s37, 1
      %p193 = por %p191, %p192
      %p195 = scmp.ne.s32.totalorder %s180, %s194
      %p196 = scmp.eq.s32.totalorder %s37, 0
      %p197 = por %p195, %p196
      %s199 = sadd.s32 %s198, 1
      %p202 = scmp.eq.s32.totalorder %s31, 1
      %p203 = scmp.ne.s32.totalorder %s198, %s200
      %p204 = scmp.eq.s32.totalorder %s31, 0
      %p205 = por %p203, %p204
      %p206 = scmp.ne.s32.totalorder %s198, %s200
      %p207 = scmp.eq.s32.totalorder %s36, 1
      %p208 = por %p206, %p207
      %p209 = scmp.ne.s32.totalorder %s200, %s201
      %p210 = scmp.eq.s32.totalorder %s36, 0
      %p211 = por %p209, %p210
      %p212 = scmp.ne.s32.totalorder %s200, %s201
      %p213 = scmp.eq.s32.totalorder %s37, 1
      %p214 = por %p212, %p213
      %p216 = scmp.ne.s32.totalorder %s201, %s215
      %p217 = scmp.eq.s32.totalorder %s37, 0
      %p218 = por %p216, %p217
      %s220 = sadd.s32 %s219, 1
      %p223 = scmp.eq.s32.totalorder %s31, 1
      %p224 = scmp.ne.s32.totalorder %s219, %s221
      %p225 = scmp.eq.s32.totalorder %s31, 0
      %p226 = por %p224, %p225
      %p227 = scmp.ne.s32.totalorder %s219, %s221
      %p228 = scmp.eq.s32.totalorder %s36, 1
      %p229 = por %p227, %p228
      %p230 = scmp.ne.s32.totalorder %s221, %s222
      %p231 = scmp.eq.s32.totalorder %s36, 0
      %p232 = por %p230, %p231
      %p233 = scmp.ne.s32.totalorder %s221, %s222
      %p234 = scmp.eq.s32.totalorder %s37, 1
      %p235 = por %p233, %p234
      %p237 = scmp.ne.s32.totalorder %s222, %s236
      %p238 = scmp.eq.s32.totalorder %s37, 0
      %p239 = por %p237, %p238
      %s240 = ssub.s32 %s38, %s50
      %s241 = ssub.s32 %s39, %s46
      %s242 = sor.u32 %s240, %s241
      %p243 = scmp.eq.s32.totalorder %s242, 0
      %s245 = sadd.s32 %s244, 1
      %s246 = scalar_select %p243, %s244, %s245
      %p249 = pneg %p243
      %p250 = scmp.eq.s32.totalorder %s31, 1
      %p251 = por %p249, %p250
      %p252 = scmp.ne.s32.totalorder %s244, %s247
      %p253 = scmp.eq.s32.totalorder %s31, 0
      %p254 = por %p252, %p253
      %p255 = scmp.ne.s32.totalorder %s244, %s247
      %p256 = scmp.eq.s32.totalorder %s36, 1
      %p257 = por %p255, %p256
      %p258 = scmp.ne.s32.totalorder %s247, %s248
      %p259 = scmp.eq.s32.totalorder %s36, 0
      %p260 = por %p258, %p259
      %p261 = scmp.ne.s32.totalorder %s247, %s248
      %p262 = scmp.eq.s32.totalorder %s37, 1
      %p263 = por %p261, %p262
      %p265 = scmp.ne.s32.totalorder %s248, %s264
      %p266 = scmp.eq.s32.totalorder %s37, 0
      %p267 = por %p265, %p266
      %p268 = scmp.le.s32.totalorder 1, %s31
      %p269 = scmp.lt.s32.totalorder %s31, 3
      %p270 = pnand %p268, %p269
      %p271 = pneg %p270
      // Predicated region
      $region9: #{tpu_custom_call.1} parent=5 // pred_check
        _
      $region10: #{tpu_custom_call.1} parent=5 // pred_check_branch
        %273 = sbr.rel (%p270) target = $region12
      $region11: #{tpu_custom_call.1} parent=5 // pred_region
        %s274 = ssub.s32 %s31, 1
        // Predicated region
        $region13: #{tpu_custom_call.1} parent=11 // pred_check
          %p275 = pneg %p148
        $region14: #{tpu_custom_call.1} parent=11 // pred_check_branch
          %277 = sbr.rel (%p275) target = $region16
        $region15: #{tpu_custom_call.1} parent=11 // pred_region
          %s279 = ssub.s32 512, 512
          %280 = vsyncadd [#allocation11], %s279
          %s281 = sshll.u32 [#allocation10], 4
          %s282 = int_to_ptr.vmem [resolvable:$true] %s281
          %287 = dma.hbm_to_vmem [thread:$0]  %s4, 512, %s282, [#allocation11], 128, 128, 8
        $region16: #{tpu_custom_call.1} parent=11 // pred_fallthru
          _
        // Predicated region
        $region17: #{tpu_custom_call.1} parent=11 // pred_check
          %p288 = pneg %p169
        $region18: #{tpu_custom_call.1} parent=11 // pred_check_branch
          %290 = sbr.rel (%p288) target = $region20
        $region19: #{tpu_custom_call.1} parent=11 // pred_region
          %s292 = ssub.s32 512, 512
          %293 = vsyncadd [#allocation11], %s292
          %s294 = sshll.u32 [#allocation12], 4
          %s295 = int_to_ptr.vmem [resolvable:$true] %s294
          %300 = dma.hbm_to_vmem [thread:$0]  %s5, 512, %s295, [#allocation11], 128, 128, 8
        $region20: #{tpu_custom_call.1} parent=11 // pred_fallthru
          _
        // Predicated region
        $region21: #{tpu_custom_call.1} parent=11 // pred_check
          %p301 = pneg %p190
        $region22: #{tpu_custom_call.1} parent=11 // pred_check_branch
          %303 = sbr.rel (%p301) target = $region24
        $region23: #{tpu_custom_call.1} parent=11 // pred_region
          %s305 = ssub.s32 512, 512
          %306 = vsyncadd [#allocation14], %s305
          %s307 = sshll.u32 [#allocation13], 4
          %s308 = int_to_ptr.vmem [resolvable:$true] %s307
          %313 = dma.hbm_to_vmem [thread:$0]  %s6, 512, %s308, [#allocation14], 128, 128, 8
        $region24: #{tpu_custom_call.1} parent=11 // pred_fallthru
          _
        // Predicated region
        $region25: #{tpu_custom_call.1} parent=11 // pred_check
          %p314 = pneg %p211
        $region26: #{tpu_custom_call.1} parent=11 // pred_check_branch
          %316 = sbr.rel (%p314) target = $region28
        $region27: #{tpu_custom_call.1} parent=11 // pred_region
          %s318 = ssub.s32 512, 512
          %319 = vsyncadd [#allocation14], %s318
          %s320 = sshll.u32 [#allocation15], 4
          %s321 = int_to_ptr.vmem [resolvable:$true] %s320
          %326 = dma.hbm_to_vmem [thread:$0]  %s7, 512, %s321, [#allocation14], 128, 128, 8
        $region28: #{tpu_custom_call.1} parent=11 // pred_fallthru
          _
        // Predicated region
        $region29: #{tpu_custom_call.1} parent=11 // pred_check
          %p327 = pneg %p232
        $region30: #{tpu_custom_call.1} parent=11 // pred_check_branch
          %329 = sbr.rel (%p327) target = $region32
        $region31: #{tpu_custom_call.1} parent=11 // pred_region
          %s331 = ssub.s32 512, 512
          %332 = vsyncadd [#allocation17], %s331
          %s333 = sshll.u32 [#allocation16], 4
          %s334 = int_to_ptr.vmem [resolvable:$true] %s333
          %339 = dma.hbm_to_vmem [thread:$0]  %s8, 512, %s334, [#allocation17], 128, 128, 8
        $region32: #{tpu_custom_call.1} parent=11 // pred_fallthru
          _
      $region12: #{tpu_custom_call.1} parent=5 // pred_fallthru
        _
      %p340 = scmp.lt.s32.totalorder %s31, 2
      // Predicated region
      $region33: #{tpu_custom_call.1} parent=5 // pred_check
        %p341 = pneg %p340
      $region34: #{tpu_custom_call.1} parent=5 // pred_check_branch
        %343 = sbr.rel (%p341) target = $region36
      $region35: #{tpu_custom_call.1} parent=5 // pred_region
        // Predicated region
        $region37: #{tpu_custom_call.1} parent=35 // pred_check
          %p344 = pneg %p65
        $region38: #{tpu_custom_call.1} parent=35 // pred_check_branch
          %346 = sbr.rel (%p344) target = $region40
        $region39: #{tpu_custom_call.1} parent=35 // pred_region
          %s347 = sand.u32 %s55, 1
          %s348 = scalar_lea.sflag [#allocation5], %s347
          %s349 = sand.u32 %s55, 1
          %s350 = smul.addr %s349, 8
          %s351 = scalar_lea.vmem [#allocation4], %s350
          %s353 = ssub.s32 128, 128
          %354 = vsyncadd %s348, %s353
          %s355 = sadd.s32 %s39, %s38
          %s356 = smul.addr %s355, 128
          %s357 = scalar_lea.hbm %s1, %s356
          %s359 = sshll.u32 %s351, 4
          %s360 = int_to_ptr.vmem [resolvable:$true] %s359
          %362 = dma.hbm_to_vmem [thread:$0]  %s357, 128, %s360, %s348
        $region40: #{tpu_custom_call.1} parent=35 // pred_fallthru
          _
        // Predicated region
        $region41: #{tpu_custom_call.1} parent=35 // pred_check
          %p363 = pneg %p93
        $region42: #{tpu_custom_call.1} parent=35 // pred_check_branch
          %365 = sbr.rel (%p363) target = $region44
        $region43: #{tpu_custom_call.1} parent=35 // pred_region
          %s366 = sand.u32 %s31, 1
          %s367 = scalar_lea.sflag [#allocation8], %s366
          %s368 = sand.u32 %s83, 1
          %s369 = smul.addr %s368, 8
          %s370 = scalar_lea.vmem [#allocation7], %s369
          %s372 = ssub.s32 128, 128
          %373 = vsyncadd %s367, %s372
          %s374 = sadd.s32 %s39, %s38
          %s375 = smul.addr %s374, 128
          %s376 = scalar_lea.hbm %s2, %s375
          %s378 = sshll.u32 %s370, 4
          %s379 = int_to_ptr.vmem [resolvable:$true] %s378
          %381 = dma.hbm_to_vmem [thread:$0]  %s376, 128, %s379, %s367
        $region44: #{tpu_custom_call.1} parent=35 // pred_fallthru
          _
        // Predicated region
        $region45: #{tpu_custom_call.1} parent=35 // pred_check
          %p382 = pneg %p121
        $region46: #{tpu_custom_call.1} parent=35 // pred_check_branch
          %384 = sbr.rel (%p382) target = $region48
        $region47: #{tpu_custom_call.1} parent=35 // pred_region
          %s385 = sand.u32 %s31, 1
          %s386 = scalar_lea.sflag [#allocation8], %s385
          %s387 = sand.u32 %s111, 1
          %s388 = smul.addr %s387, 8
          %s389 = scalar_lea.vmem [#allocation9], %s388
          %s391 = ssub.s32 128, 128
          %392 = vsyncadd %s386, %s391
          %s393 = sadd.s32 %s39, %s38
          %s394 = smul.addr %s393, 128
          %s395 = scalar_lea.hbm %s3, %s394
          %s397 = sshll.u32 %s389, 4
          %s398 = int_to_ptr.vmem [resolvable:$true] %s397
          %400 = dma.hbm_to_vmem [thread:$0]  %s395, 128, %s398, %s386
        $region48: #{tpu_custom_call.1} parent=35 // pred_fallthru
          _
      $region36: #{tpu_custom_call.1} parent=5 // pred_fallthru
        _
      %p401 = scmp.le.s32.totalorder 1, %s31
      %p402 = scmp.lt.s32.totalorder %s31, 3
      %p403 = pnand %p401, %p402
      %p404 = pneg %p403
      // Predicated region
      $region49: #{tpu_custom_call.1} parent=5 // pred_check
        _
      $region50: #{tpu_custom_call.1} parent=5 // pred_check_branch
        %406 = sbr.rel (%p403) target = $region52
      $region51: #{tpu_custom_call.1} parent=5 // pred_region
        %s407 = ssub.s32 %s31, 1
        %s408 = sand.u32 %s58, 1
        %s409 = scalar_lea.sflag [#allocation5], %s408
        %s410 = sand.u32 %s58, 1
        %s411 = smul.addr %s410, 8
        %s412 = scalar_lea.vmem [#allocation4], %s411
        // Predicated region
        $region53: #{tpu_custom_call.1} parent=51 // pred_check
          %p413 = pneg %p71
        $region54: #{tpu_custom_call.1} parent=51 // pred_check_branch
          %415 = sbr.rel (%p413) target = $region56
        $region55: #{tpu_custom_call.1} parent=51 // pred_region
          %416 = dma.done %s409, 128
        $region56: #{tpu_custom_call.1} parent=51 // pred_fallthru
          _
        %s417 = sand.u32 %s36, 1
        %s418 = scalar_lea.sflag [#allocation8], %s417
        %s419 = sand.u32 %s86, 1
        %s420 = smul.addr %s419, 8
        %s421 = scalar_lea.vmem [#allocation7], %s420
        // Predicated region
        $region57: #{tpu_custom_call.1} parent=51 // pred_check
          %p422 = pneg %p99
        $region58: #{tpu_custom_call.1} parent=51 // pred_check_branch
          %424 = sbr.rel (%p422) target = $region60
        $region59: #{tpu_custom_call.1} parent=51 // pred_region
          %425 = dma.done %s418, 128
        $region60: #{tpu_custom_call.1} parent=51 // pred_fallthru
          _
        %s426 = sand.u32 %s36, 1
        %s427 = scalar_lea.sflag [#allocation8], %s426
        %s428 = sand.u32 %s114, 1
        %s429 = smul.addr %s428, 8
        %s430 = scalar_lea.vmem [#allocation9], %s429
        // Predicated region
        $region61: #{tpu_custom_call.1} parent=51 // pred_check
          %p431 = pneg %p127
        $region62: #{tpu_custom_call.1} parent=51 // pred_check_branch
          %433 = sbr.rel (%p431) target = $region64
        $region63: #{tpu_custom_call.1} parent=51 // pred_region
          %434 = dma.done %s427, 128
        $region64: #{tpu_custom_call.1} parent=51 // pred_fallthru
          _
        // Predicated region
        $region65: #{tpu_custom_call.1} parent=51 // pred_check
          %p435 = pneg %p148
        $region66: #{tpu_custom_call.1} parent=51 // pred_check_branch
          %437 = sbr.rel (%p435) target = $region68
        $region67: #{tpu_custom_call.1} parent=51 // pred_region
          %438 = dma.done [#allocation11], 512
        $region68: #{tpu_custom_call.1} parent=51 // pred_fallthru
          _
        // Predicated region
        $region69: #{tpu_custom_call.1} parent=51 // pred_check
          %p439 = pneg %p169
        $region70: #{tpu_custom_call.1} parent=51 // pred_check_branch
          %441 = sbr.rel (%p439) target = $region72
        $region71: #{tpu_custom_call.1} parent=51 // pred_region
          %442 = dma.done [#allocation11], 512
        $region72: #{tpu_custom_call.1} parent=51 // pred_fallthru
          _
        // Predicated region
        $region73: #{tpu_custom_call.1} parent=51 // pred_check
          %p443 = pneg %p190
        $region74: #{tpu_custom_call.1} parent=51 // pred_check_branch
          %445 = sbr.rel (%p443) target = $region76
        $region75: #{tpu_custom_call.1} parent=51 // pred_region
          %446 = dma.done [#allocation14], 512
        $region76: #{tpu_custom_call.1} parent=51 // pred_fallthru
          _
        // Predicated region
        $region77: #{tpu_custom_call.1} parent=51 // pred_check
          %p447 = pneg %p211
        $region78: #{tpu_custom_call.1} parent=51 // pred_check_branch
          %449 = sbr.rel (%p447) target = $region80
        $region79: #{tpu_custom_call.1} parent=51 // pred_region
          %450 = dma.done [#allocation14], 512
        $region80: #{tpu_custom_call.1} parent=51 // pred_fallthru
          _
        // Predicated region
        $region81: #{tpu_custom_call.1} parent=51 // pred_check
          %p451 = pneg %p232
        $region82: #{tpu_custom_call.1} parent=51 // pred_check_branch
          %453 = sbr.rel (%p451) target = $region84
        $region83: #{tpu_custom_call.1} parent=51 // pred_region
          %454 = dma.done [#allocation17], 512
        $region84: #{tpu_custom_call.1} parent=51 // pred_fallthru
          _
        %s455 = sand.u32 %s58, 1
        %s456 = scalar_lea.sflag [#allocation5], %s455
        %s457 = sand.u32 %s58, 1
        %s458 = smul.addr %s457, 8
        %s459 = scalar_lea.vmem [#allocation4], %s458
        %p460 = pneg %p71
        %p461 = pneg %p68
        %s462 = sand.u32 %s36, 1
        %s463 = scalar_lea.sflag [#allocation8], %s462
        %s464 = sand.u32 %s86, 1
        %s465 = smul.addr %s464, 8
        %s466 = scalar_lea.vmem [#allocation7], %s465
        %p467 = pneg %p99
        %p468 = pneg %p96
        %s469 = sand.u32 %s36, 1
        %s470 = scalar_lea.sflag [#allocation8], %s469
        %s471 = sand.u32 %s114, 1
        %s472 = smul.addr %s471, 8
        %s473 = scalar_lea.vmem [#allocation9], %s472
        %p474 = pneg %p127
        %p475 = pneg %p124
        %p476 = pneg %p148
        %p477 = pneg %p145
        %p478 = pneg %p169
        %p479 = pneg %p166
        %p480 = pneg %p190
        %p481 = pneg %p187
        %p482 = pneg %p211
        %p483 = pneg %p208
        %p484 = pneg %p232
        %p485 = pneg %p229
        %p486 = pneg %p260
        %p487 = pneg %p257
        %s488 = sand.u32 %s247, 1
        %s489 = scalar_lea.sflag [#allocation6], %s488
        %s490 = sand.u32 %s247, 1
        %s491 = smul.addr %s490, 32
        %s492 = scalar_lea.vmem [#allocation18], %s491
        %v493 = vld [vmem:[%s412] sm:$0xff]
        %v494 = vld [vmem:[%s421] sm:$0xff]
        %v495 = vld [vmem:[%s430] sm:$0xff]
        %v496 = vld [vmem:[#allocation10] sm:$0xff]
        %v497 = vld [vmem:[#allocation10 + $0x8] sm:$0xff]
        %v498 = vld [vmem:[#allocation10 + $0x10] sm:$0xff]
        %v499 = vld [vmem:[#allocation10 + $0x18] sm:$0xff]
        %vm500 = vcmask 261120
        %v502 = vsel %vm500, %v494, 0
        %504 = vmatprep.subr.mxu0 0.0
        %505 = vmatpush1.msra.mxu0 %v496
        %506 = vmatprep.subr.mxu0 0.0
        %507 = vmatpush1.msra.mxu0 %v497
        %508 = vmatprep.subr.mxu0 0.0
        %509 = vmatpush1.msra.mxu0 %v498
        %510 = vmatprep.subr.mxu0 0.0
        %511 = vmatpush1.msra.mxu0 %v499
        %512 = vmatprep.subr.mxu0 0.0
        %513 = vmatpush1.msra.mxu0 0.0
        %514 = vmatprep.subr.mxu0 0.0
        %515 = vmatpush1.msra.mxu0 0.0
        %516 = vmatprep.subr.mxu0 0.0
        %517 = vmatpush1.msra.mxu0 0.0
        %518 = vmatprep.subr.mxu0 0.0
        %519 = vmatpush1.msra.mxu0 0.0
        %520 = vmatprep.subr.mxu0 0.0
        %521 = vmatpush1.msra.mxu0 0.0
        %522 = vmatprep.subr.mxu0 0.0
        %523 = vmatpush1.msra.mxu0 0.0
        %524 = vmatprep.subr.mxu0 0.0
        %525 = vmatpush1.msra.mxu0 0.0
        %526 = vmatprep.subr.mxu0 0.0
        %527 = vmatpush1.msra.mxu0 0.0
        %528 = vmatprep.subr.mxu0 0.0
        %529 = vmatpush1.msra.mxu0 0.0
        %530 = vmatprep.subr.mxu0 0.0
        %531 = vmatpush1.msra.mxu0 0.0
        %532 = vmatprep.subr.mxu0 0.0
        %533 = vmatpush1.msra.mxu0 0.0
        %534 = vmatprep.subr.mxu0 0.0
        %535 = vmatpush1.msra.mxu0 0.0
        %536 = vmatprep.subr.mxu0 0.0
        %537 = vmatpush1.msra.mxu0 0.0
        %538 = vmatprep.subr.mxu0 0.0
        %539 = vmatpush1.msra.mxu0 0.0
        %540 = vmatprep.subr.mxu0 0.0
        %541 = vmatpush1.msra.mxu0 0.0
        %542 = vmatprep.subr.mxu0 0.0
        %543 = vmatpush1.msra.mxu0 0.0
        %544 = vmatprep.subr.mxu0 0.0
        %545 = vmatpush1.msra.mxu0 0.0
        %546 = vmatprep.subr.mxu0 0.0
        %547 = vmatpush1.msra.mxu0 0.0
        %548 = vmatprep.subr.mxu0 0.0
        %549 = vmatpush1.msra.mxu0 0.0
        %550 = vmatprep.subr.mxu0 0.0
        %551 = vmatpush1.msra.mxu0 0.0
        %552 = vmatprep.subr.mxu0 0.0
        %553 = vmatpush1.msra.mxu0 0.0
        %554 = vmatprep.subr.mxu0 0.0
        %555 = vmatpush1.msra.mxu0 0.0
        %556 = vmatprep.subr.mxu0 0.0
        %557 = vmatpush1.msra.mxu0 0.0
        %558 = vmatprep.subr.mxu0 0.0
        %559 = vmatpush1.msra.mxu0 0.0
        %560 = vmatprep.subr.mxu0 0.0
        %561 = vmatpush1.msra.mxu0 0.0
        %562 = vmatprep.subr.mxu0 0.0
        %563 = vmatpush1.msra.mxu0 0.0
        %564 = vmatprep.subr.mxu0 0.0
        %565 = vmatpush1.msra.mxu0 0.0
        %566 = vmatprep.subr.mxu0 0.0
        %567 = vmatpush1.msra.mxu0 0.0
        %568 = vmatprep.mubr.f32.mxu0 0.0
        %569 = vmatmul.mubr.f32.gmra.mrb[0].mxu0 %v502
        %v570 = vpop.f32.mrb[0].mxu0
        %v571 = vadd.f32 0.0, %v570
        %v572 = vpop.f32.mrb[0].mxu0
        %573 = vdwg.mxu0
        %v574 = vld [vmem:[#allocation12] sm:$0xff]
        %v575 = vld [vmem:[#allocation12 + $0x8] sm:$0xff]
        %v576 = vld [vmem:[#allocation12 + $0x10] sm:$0xff]
        %v577 = vld [vmem:[#allocation12 + $0x18] sm:$0xff]
        %v579 = vsel %vm500, %v493, 0
        %581 = vmatprep.subr.mxu0 0.0
        %582 = vmatpush1.msra.mxu0 %v574
        %583 = vmatprep.subr.mxu0 0.0
        %584 = vmatpush1.msra.mxu0 %v575
        %585 = vmatprep.subr.mxu0 0.0
        %586 = vmatpush1.msra.mxu0 %v576
        %587 = vmatprep.subr.mxu0 0.0
        %588 = vmatpush1.msra.mxu0 %v577
        %589 = vmatprep.subr.mxu0 0.0
        %590 = vmatpush1.msra.mxu0 0.0
        %591 = vmatprep.subr.mxu0 0.0
        %592 = vmatpush1.msra.mxu0 0.0
        %593 = vmatprep.subr.mxu0 0.0
        %594 = vmatpush1.msra.mxu0 0.0
        %595 = vmatprep.subr.mxu0 0.0
        %596 = vmatpush1.msra.mxu0 0.0
        %597 = vmatprep.subr.mxu0 0.0
        %598 = vmatpush1.msra.mxu0 0.0
        %599 = vmatprep.subr.mxu0 0.0
        %600 = vmatpush1.msra.mxu0 0.0
        %601 = vmatprep.subr.mxu0 0.0
        %602 = vmatpush1.msra.mxu0 0.0
        %603 = vmatprep.subr.mxu0 0.0
        %604 = vmatpush1.msra.mxu0 0.0
        %605 = vmatprep.subr.mxu0 0.0
        %606 = vmatpush1.msra.mxu0 0.0
        %607 = vmatprep.subr.mxu0 0.0
        %608 = vmatpush1.msra.mxu0 0.0
        %609 = vmatprep.subr.mxu0 0.0
        %610 = vmatpush1.msra.mxu0 0.0
        %611 = vmatprep.subr.mxu0 0.0
        %612 = vmatpush1.msra.mxu0 0.0
        %613 = vmatprep.subr.mxu0 0.0
        %614 = vmatpush1.msra.mxu0 0.0
        %615 = vmatprep.subr.mxu0 0.0
        %616 = vmatpush1.msra.mxu0 0.0
        %617 = vmatprep.subr.mxu0 0.0
        %618 = vmatpush1.msra.mxu0 0.0
        %619 = vmatprep.subr.mxu0 0.0
        %620 = vmatpush1.msra.mxu0 0.0
        %621 = vmatprep.subr.mxu0 0.0
        %622 = vmatpush1.msra.mxu0 0.0
        %623 = vmatprep.subr.mxu0 0.0
        %624 = vmatpush1.msra.mxu0 0.0
        %625 = vmatprep.subr.mxu0 0.0
        %626 = vmatpush1.msra.mxu0 0.0
        %627 = vmatprep.subr.mxu0 0.0
        %628 = vmatpush1.msra.mxu0 0.0
        %629 = vmatprep.subr.mxu0 0.0
        %630 = vmatpush1.msra.mxu0 0.0
        %631 = vmatprep.subr.mxu0 0.0
        %632 = vmatpush1.msra.mxu0 0.0
        %633 = vmatprep.subr.mxu0 0.0
        %634 = vmatpush1.msra.mxu0 0.0
        %635 = vmatprep.subr.mxu0 0.0
        %636 = vmatpush1.msra.mxu0 0.0
        %637 = vmatprep.subr.mxu0 0.0
        %638 = vmatpush1.msra.mxu0 0.0
        %639 = vmatprep.subr.mxu0 0.0
        %640 = vmatpush1.msra.mxu0 0.0
        %641 = vmatprep.subr.mxu0 0.0
        %642 = vmatpush1.msra.mxu0 0.0
        %643 = vmatprep.subr.mxu0 0.0
        %644 = vmatpush1.msra.mxu0 0.0
        %645 = vmatprep.mubr.f32.mxu0 0.0
        %646 = vmatmul.mubr.f32.gmra.mrb[0].mxu0 %v579
        %v647 = vpop.f32.mrb[0].mxu0
        %v648 = vadd.f32 0.0, %v647
        %v649 = vpop.f32.mrb[0].mxu0
        %650 = vdwg.mxu0
        %v651 = vld [vmem:[#allocation13] sm:$0xff]
        %v652 = vld [vmem:[#allocation13 + $0x8] sm:$0xff]
        %v653 = vld [vmem:[#allocation13 + $0x10] sm:$0xff]
        %v654 = vld [vmem:[#allocation13 + $0x18] sm:$0xff]
        %v655 = vld [vmem:[#allocation15] sm:$0xff]
        %v656 = vld [vmem:[#allocation15 + $0x8] sm:$0xff]
        %v657 = vld [vmem:[#allocation15 + $0x10] sm:$0xff]
        %v658 = vld [vmem:[#allocation15 + $0x18] sm:$0xff]
        %659 = vmatprep.subr.mxu0 0.0
        %660 = vmatpush1.msra.mxu0 %v655
        %661 = vmatprep.subr.mxu0 0.0
        %662 = vmatpush1.msra.mxu0 %v656
        %663 = vmatprep.subr.mxu0 0.0
        %664 = vmatpush1.msra.mxu0 %v657
        %665 = vmatprep.subr.mxu0 0.0
        %666 = vmatpush1.msra.mxu0 %v658
        %667 = vmatprep.subr.mxu0 0.0
        %668 = vmatpush1.msra.mxu0 0.0
        %669 = vmatprep.subr.mxu0 0.0
        %670 = vmatpush1.msra.mxu0 0.0
        %671 = vmatprep.subr.mxu0 0.0
        %672 = vmatpush1.msra.mxu0 0.0
        %673 = vmatprep.subr.mxu0 0.0
        %674 = vmatpush1.msra.mxu0 0.0
        %675 = vmatprep.subr.mxu0 0.0
        %676 = vmatpush1.msra.mxu0 0.0
        %677 = vmatprep.subr.mxu0 0.0
        %678 = vmatpush1.msra.mxu0 0.0
        %679 = vmatprep.subr.mxu0 0.0
        %680 = vmatpush1.msra.mxu0 0.0
        %681 = vmatprep.subr.mxu0 0.0
        %682 = vmatpush1.msra.mxu0 0.0
        %683 = vmatprep.subr.mxu0 0.0
        %684 = vmatpush1.msra.mxu0 0.0
        %685 = vmatprep.subr.mxu0 0.0
        %686 = vmatpush1.msra.mxu0 0.0
        %687 = vmatprep.subr.mxu0 0.0
        %688 = vmatpush1.msra.mxu0 0.0
        %689 = vmatprep.subr.mxu0 0.0
        %690 = vmatpush1.msra.mxu0 0.0
        %691 = vmatprep.subr.mxu0 0.0
        %692 = vmatpush1.msra.mxu0 0.0
        %693 = vmatprep.subr.mxu0 0.0
        %694 = vmatpush1.msra.mxu0 0.0
        %695 = vmatprep.subr.mxu0 0.0
        %696 = vmatpush1.msra.mxu0 0.0
        %697 = vmatprep.subr.mxu0 0.0
        %698 = vmatpush1.msra.mxu0 0.0
        %699 = vmatprep.subr.mxu0 0.0
        %700 = vmatpush1.msra.mxu0 0.0
        %701 = vmatprep.subr.mxu0 0.0
        %702 = vmatpush1.msra.mxu0 0.0
        %703 = vmatprep.subr.mxu0 0.0
        %704 = vmatpush1.msra.mxu0 0.0
        %705 = vmatprep.subr.mxu0 0.0
        %706 = vmatpush1.msra.mxu0 0.0
        %707 = vmatprep.subr.mxu0 0.0
        %708 = vmatpush1.msra.mxu0 0.0
        %709 = vmatprep.subr.mxu0 0.0
        %710 = vmatpush1.msra.mxu0 0.0
        %711 = vmatprep.subr.mxu0 0.0
        %712 = vmatpush1.msra.mxu0 0.0
        %713 = vmatprep.subr.mxu0 0.0
        %714 = vmatpush1.msra.mxu0 0.0
        %715 = vmatprep.subr.mxu0 0.0
        %716 = vmatpush1.msra.mxu0 0.0
        %717 = vmatprep.subr.mxu0 0.0
        %718 = vmatpush1.msra.mxu0 0.0
        %719 = vmatprep.subr.mxu0 0.0
        %720 = vmatpush1.msra.mxu0 0.0
        %721 = vmatprep.subr.mxu0 0.0
        %722 = vmatpush1.msra.mxu0 0.0
        %723 = vmatprep.mubr.f32.mxu0 0.0
        %724 = vmatmul.mubr.f32.gmra.mrb[0].mxu0 %v502
        %v725 = vpop.f32.mrb[0].mxu0
        %v726 = vadd.f32 0.0, %v725
        %v727 = vpop.f32.mrb[0].mxu0
        %728 = vdwg.mxu0
        %729 = vmatprep.subr.mxu0 0.0
        %730 = vmatpush1.msra.mxu0 %v651
        %731 = vmatprep.subr.mxu0 0.0
        %732 = vmatpush1.msra.mxu0 %v652
        %733 = vmatprep.subr.mxu0 0.0
        %734 = vmatpush1.msra.mxu0 %v653
        %735 = vmatprep.subr.mxu0 0.0
        %736 = vmatpush1.msra.mxu0 %v654
        %737 = vmatprep.subr.mxu0 0.0
        %738 = vmatpush1.msra.mxu0 0.0
        %739 = vmatprep.subr.mxu0 0.0
        %740 = vmatpush1.msra.mxu0 0.0
        %741 = vmatprep.subr.mxu0 0.0
        %742 = vmatpush1.msra.mxu0 0.0
        %743 = vmatprep.subr.mxu0 0.0
        %744 = vmatpush1.msra.mxu0 0.0
        %745 = vmatprep.subr.mxu0 0.0
        %746 = vmatpush1.msra.mxu0 0.0
        %747 = vmatprep.subr.mxu0 0.0
        %748 = vmatpush1.msra.mxu0 0.0
        %749 = vmatprep.subr.mxu0 0.0
        %750 = vmatpush1.msra.mxu0 0.0
        %751 = vmatprep.subr.mxu0 0.0
        %752 = vmatpush1.msra.mxu0 0.0
        %753 = vmatprep.subr.mxu0 0.0
        %754 = vmatpush1.msra.mxu0 0.0
        %755 = vmatprep.subr.mxu0 0.0
        %756 = vmatpush1.msra.mxu0 0.0
        %757 = vmatprep.subr.mxu0 0.0
        %758 = vmatpush1.msra.mxu0 0.0
        %759 = vmatprep.subr.mxu0 0.0
        %760 = vmatpush1.msra.mxu0 0.0
        %761 = vmatprep.subr.mxu0 0.0
        %762 = vmatpush1.msra.mxu0 0.0
        %763 = vmatprep.subr.mxu0 0.0
        %764 = vmatpush1.msra.mxu0 0.0
        %765 = vmatprep.subr.mxu0 0.0
        %766 = vmatpush1.msra.mxu0 0.0
        %767 = vmatprep.subr.mxu0 0.0
        %768 = vmatpush1.msra.mxu0 0.0
        %769 = vmatprep.subr.mxu0 0.0
        %770 = vmatpush1.msra.mxu0 0.0
        %771 = vmatprep.subr.mxu0 0.0
        %772 = vmatpush1.msra.mxu0 0.0
        %773 = vmatprep.subr.mxu0 0.0
        %774 = vmatpush1.msra.mxu0 0.0
        %775 = vmatprep.subr.mxu0 0.0
        %776 = vmatpush1.msra.mxu0 0.0
        %777 = vmatprep.subr.mxu0 0.0
        %778 = vmatpush1.msra.mxu0 0.0
        %779 = vmatprep.subr.mxu0 0.0
        %780 = vmatpush1.msra.mxu0 0.0
        %781 = vmatprep.subr.mxu0 0.0
        %782 = vmatpush1.msra.mxu0 0.0
        %783 = vmatprep.subr.mxu0 0.0
        %784 = vmatpush1.msra.mxu0 0.0
        %785 = vmatprep.subr.mxu0 0.0
        %786 = vmatpush1.msra.mxu0 0.0
        %787 = vmatprep.subr.mxu0 0.0
        %788 = vmatpush1.msra.mxu0 0.0
        %789 = vmatprep.subr.mxu0 0.0
        %790 = vmatpush1.msra.mxu0 0.0
        %791 = vmatprep.subr.mxu0 0.0
        %792 = vmatpush1.msra.mxu0 0.0
        %793 = vmatprep.mubr.f32.mxu0 0.0
        %794 = vmatmul.mubr.f32.gmra.mrb[0].mxu0 %v579
        %v795 = vpop.f32.mrb[0].mxu0
        %v796 = vadd.f32 %v726, %v795
        %v797 = vpop.f32.mrb[0].mxu0
        %798 = vdwg.mxu0
        %v799 = vld [vmem:[#allocation16] sm:$0xff]
        %v800 = vld [vmem:[#allocation16 + $0x8] sm:$0xff]
        %v801 = vld [vmem:[#allocation16 + $0x10] sm:$0xff]
        %v802 = vld [vmem:[#allocation16 + $0x18] sm:$0xff]
        %v804 = vsel %vm500, %v495, 0
        %806 = vmatprep.subr.mxu0 0.0
        %807 = vmatpush1.msra.mxu0 %v799
        %808 = vmatprep.subr.mxu0 0.0
        %809 = vmatpush1.msra.mxu0 %v800
        %810 = vmatprep.subr.mxu0 0.0
        %811 = vmatpush1.msra.mxu0 %v801
        %812 = vmatprep.subr.mxu0 0.0
        %813 = vmatpush1.msra.mxu0 %v802
        %814 = vmatprep.subr.mxu0 0.0
        %815 = vmatpush1.msra.mxu0 0.0
        %816 = vmatprep.subr.mxu0 0.0
        %817 = vmatpush1.msra.mxu0 0.0
        %818 = vmatprep.subr.mxu0 0.0
        %819 = vmatpush1.msra.mxu0 0.0
        %820 = vmatprep.subr.mxu0 0.0
        %821 = vmatpush1.msra.mxu0 0.0
        %822 = vmatprep.subr.mxu0 0.0
        %823 = vmatpush1.msra.mxu0 0.0
        %824 = vmatprep.subr.mxu0 0.0
        %825 = vmatpush1.msra.mxu0 0.0
        %826 = vmatprep.subr.mxu0 0.0
        %827 = vmatpush1.msra.mxu0 0.0
        %828 = vmatprep.subr.mxu0 0.0
        %829 = vmatpush1.msra.mxu0 0.0
        %830 = vmatprep.subr.mxu0 0.0
        %831 = vmatpush1.msra.mxu0 0.0
        %832 = vmatprep.subr.mxu0 0.0
        %833 = vmatpush1.msra.mxu0 0.0
        %834 = vmatprep.subr.mxu0 0.0
        %835 = vmatpush1.msra.mxu0 0.0
        %836 = vmatprep.subr.mxu0 0.0
        %837 = vmatpush1.msra.mxu0 0.0
        %838 = vmatprep.subr.mxu0 0.0
        %839 = vmatpush1.msra.mxu0 0.0
        %840 = vmatprep.subr.mxu0 0.0
        %841 = vmatpush1.msra.mxu0 0.0
        %842 = vmatprep.subr.mxu0 0.0
        %843 = vmatpush1.msra.mxu0 0.0
        %844 = vmatprep.subr.mxu0 0.0
        %845 = vmatpush1.msra.mxu0 0.0
        %846 = vmatprep.subr.mxu0 0.0
        %847 = vmatpush1.msra.mxu0 0.0
        %848 = vmatprep.subr.mxu0 0.0
        %849 = vmatpush1.msra.mxu0 0.0
        %850 = vmatprep.subr.mxu0 0.0
        %851 = vmatpush1.msra.mxu0 0.0
        %852 = vmatprep.subr.mxu0 0.0
        %853 = vmatpush1.msra.mxu0 0.0
        %854 = vmatprep.subr.mxu0 0.0
        %855 = vmatpush1.msra.mxu0 0.0
        %856 = vmatprep.subr.mxu0 0.0
        %857 = vmatpush1.msra.mxu0 0.0
        %858 = vmatprep.subr.mxu0 0.0
        %859 = vmatpush1.msra.mxu0 0.0
        %860 = vmatprep.subr.mxu0 0.0
        %861 = vmatpush1.msra.mxu0 0.0
        %862 = vmatprep.subr.mxu0 0.0
        %863 = vmatpush1.msra.mxu0 0.0
        %864 = vmatprep.subr.mxu0 0.0
        %865 = vmatpush1.msra.mxu0 0.0
        %866 = vmatprep.subr.mxu0 0.0
        %867 = vmatpush1.msra.mxu0 0.0
        %868 = vmatprep.subr.mxu0 0.0
        %869 = vmatpush1.msra.mxu0 0.0
        %870 = vmatprep.mubr.f32.mxu0 0.0
        %871 = vmatmul.mubr.f32.gmra.mrb[0].mxu0 %v804
        %v872 = vpop.f32.mrb[0].mxu0
        %v873 = vadd.f32 0.0, %v872
        %v874 = vpop.f32.mrb[0].mxu0
        %875 = vdwg.mxu0
        %v876 = vadd.f32 %v796, %v873
        %v877 = vmax.f32 %v493, 0.0
        %v878 = vadd.f32 %v493, %v571
        %v879 = vmax.f32 %v878, 0.0
        %v880 = vmax.f32 %v648, 0.0
        %v881 = vmax.f32 %v876, 0.0
        %s882 = smul.u32 %s40, 128
        %s883 = sld [smem:[#allocation3 + %s882]]
        %v884 = vstv %s883
        %v885 = vmul.f32 %v884, %v877
        %s886 = sadd.s32 %s882, 1
        %s887 = sld [smem:[#allocation3 + %s886]]
        %v888 = vstv %s887
        %v889 = vmul.f32 %v888, %v879
        %v890 = vadd.f32 %v885, %v889
        %s891 = sadd.s32 %s882, 2
        %s892 = sld [smem:[#allocation3 + %s891]]
        %v893 = vstv %s892
        %v894 = vmul.f32 %v893, %v880
        %v895 = vadd.f32 %v890, %v894
        %s896 = sadd.s32 %s882, 3
        %s897 = sld [smem:[#allocation3 + %s896]]
        %v898 = vstv %s897
        %v899 = vmul.f32 %v898, %v881
        %v900 = vadd.f32 %v895, %v899
        %901 = vst.msk [vmem:[%s492] sm:$0xff] %vm500, %v900
        %s902 = sadd.s32 %s882, 4
        %s903 = sld [smem:[#allocation3 + %s902]]
        %v904 = vstv %s903
        %v905 = vmul.f32 %v904, %v877
        %s906 = sadd.s32 %s882, 5
        %s907 = sld [smem:[#allocation3 + %s906]]
        %v908 = vstv %s907
        %v909 = vmul.f32 %v908, %v879
        %v910 = vadd.f32 %v905, %v909
        %s911 = sadd.s32 %s882, 6
        %s912 = sld [smem:[#allocation3 + %s911]]
        %v913 = vstv %s912
        %v914 = vmul.f32 %v913, %v880
        %v915 = vadd.f32 %v910, %v914
        %s916 = sadd.s32 %s882, 7
        %s917 = sld [smem:[#allocation3 + %s916]]
        %v918 = vstv %s917
        %v919 = vmul.f32 %v918, %v881
        %v920 = vadd.f32 %v915, %v919
        %s921 = scalar_lea.vmem %s492, 8 [#allocation18]
        %922 = vst.msk [vmem:[%s921] sm:$0xff] %vm500, %v920
        %s923 = sadd.s32 %s882, 8
        %s924 = sld [smem:[#allocation3 + %s923]]
        %v925 = vstv %s924
        %v926 = vmul.f32 %v925, %v877
        %s927 = sadd.s32 %s882, 9
        %s928 = sld [smem:[#allocation3 + %s927]]
        %v929 = vstv %s928
        %v930 = vmul.f32 %v929, %v879
        %v931 = vadd.f32 %v926, %v930
        %s932 = sadd.s32 %s882, 10
        %s933 = sld [smem:[#allocation3 + %s932]]
        %v934 = vstv %s933
        %v935 = vmul.f32 %v934, %v880
        %v936 = vadd.f32 %v931, %v935
        %s937 = sadd.s32 %s882, 11
        %s938 = sld [smem:[#allocation3 + %s937]]
        %v939 = vstv %s938
        %v940 = vmul.f32 %v939, %v881
        %v941 = vadd.f32 %v936, %v940
        %s942 = scalar_lea.vmem %s492, 16 [#allocation18]
        %943 = vst.msk [vmem:[%s942] sm:$0xff] %vm500, %v941
        %s944 = sadd.s32 %s882, 12
        %s945 = sld [smem:[#allocation3 + %s944]]
        %v946 = vstv %s945
        %v947 = vmul.f32 %v946, %v877
        %s948 = sadd.s32 %s882, 13
        %s949 = sld [smem:[#allocation3 + %s948]]
        %v950 = vstv %s949
        %v951 = vmul.f32 %v950, %v879
        %v952 = vadd.f32 %v947, %v951
        %s953 = sadd.s32 %s882, 14
        %s954 = sld [smem:[#allocation3 + %s953]]
        %v955 = vstv %s954
        %v956 = vmul.f32 %v955, %v880
        %v957 = vadd.f32 %v952, %v956
        %s958 = sadd.s32 %s882, 15
        %s959 = sld [smem:[#allocation3 + %s958]]
        %v960 = vstv %s959
        %v961 = vmul.f32 %v960, %v881
        %v962 = vadd.f32 %v957, %v961
        %s963 = scalar_lea.vmem %s492, 24 [#allocation18]
        %964 = vst.msk [vmem:[%s963] sm:$0xff] %vm500, %v962
        %s965 = sand.u32 %s247, 1
        %s966 = scalar_lea.sflag [#allocation6], %s965
        %s967 = sand.u32 %s247, 1
        %s968 = smul.addr %s967, 32
        %s969 = scalar_lea.vmem [#allocation18], %s968
        // Predicated region
        $region85: #{tpu_custom_call.1} parent=51 // pred_check
          %p970 = pneg %p257
        $region86: #{tpu_custom_call.1} parent=51 // pred_check_branch
          %972 = sbr.rel (%p970) target = $region88
        $region87: #{tpu_custom_call.1} parent=51 // pred_region
          %s974 = ssub.s32 512, 512
          %975 = vsyncadd %s966, %s974
          %s976 = sadd.s32 %s41, %s40
          %s977 = smul.addr %s976, 128
          %s978 = scalar_lea.hbm %s9, %s977
          %s979 = sshll.u32 %s969, 4
          %s980 = int_to_ptr.vmem [resolvable:$true] %s979
          %985 = dma.vmem_to_hbm [thread:$0]  %s980, 512, %s978, %s966, 128, 256, 8
        $region88: #{tpu_custom_call.1} parent=51 // pred_fallthru
          _
      $region52: #{tpu_custom_call.1} parent=5 // pred_fallthru
        _
      %p986 = scmp.le.s32.totalorder 2, %s31
      // Predicated region
      $region89: #{tpu_custom_call.1} parent=5 // pred_check
        %p987 = pneg %p986
      $region90: #{tpu_custom_call.1} parent=5 // pred_check_branch
        %989 = sbr.rel (%p987) target = $region92
      $region91: #{tpu_custom_call.1} parent=5 // pred_region
        %s990 = ssub.s32 %s31, 2
        // Predicated region
        $region93: #{tpu_custom_call.1} parent=91 // pred_check
          %p991 = pneg %p263
        $region94: #{tpu_custom_call.1} parent=91 // pred_check_branch
          %993 = sbr.rel (%p991) target = $region96
        $region95: #{tpu_custom_call.1} parent=91 // pred_region
          %s994 = sand.u32 %s248, 1
          %s995 = scalar_lea.sflag [#allocation6], %s994
          %s996 = sand.u32 %s248, 1
          %s997 = smul.addr %s996, 32
          %s998 = scalar_lea.vmem [#allocation18], %s997
          %999 = dma.done %s995, 512
        $region96: #{tpu_custom_call.1} parent=91 // pred_fallthru
          _
      $region92: #{tpu_custom_call.1} parent=5 // pred_fallthru
        _
    $region6: #{tpu_custom_call.1} parent=1 // loop_footer
      %s35 = sadd.s32 1, %s31
    $region7: #{tpu_custom_call.1} parent=1 // loop_footer_branch
      %30 = sbr.rel target = $region3
    $region8: #{tpu_custom_call.1} parent=1 // loop_exit
      _
    %1000 = vsyncpa [#allocation5], 1
    %s1001 = scalar_lea.sflag [#allocation5], 1
    %1002 = vsyncpa %s1001, 1
    %1003 = vsyncpa [#allocation8], 1
    %s1004 = scalar_lea.sflag [#allocation8], 1
    %1005 = vsyncpa %s1004, 1
    %1006 = vsyncpa [#allocation11], 1
    %1007 = vsyncpa [#allocation14], 1
    %1008 = vsyncpa [#allocation17], 1
    %1009 = vsyncpa [#allocation6], 1
    %s1010 = scalar_lea.sflag [#allocation6], 1
    %1011 = vsyncpa %s1010, 1

</llo_original>
